<compile_context>
chip_gen: v5e
topology: v5e:2x2
jax: 0.10.0
libtpu: 0.0.40
codegen_flags: <defaults>
</compile_context>

<pallas_src>
import functools

import jax
import jax.numpy as jnp
from jax.experimental import pallas as pl
from jax.experimental.pallas import tpu as pltpu


# ----------------------------------------------------------------------------
# Kernel
# ----------------------------------------------------------------------------
def _rope_kernel(q_ref, k_ref, cos_ref, sin_hi_ref, sin_lo_ref, qo_ref, ko_ref,
                 *, half):
    # q_ref/k_ref : (BH, TS*D) tile of the flattened inputs (input dtype).
    # cos_ref     : (1, TS*D) f32, cos table flattened over (s, j).
    # sin_hi_ref  : (1, TS*D) f32, = +sin where j >= D/2, 0 where j < D/2.
    # sin_lo_ref  : (1, TS*D) f32, = -sin where j <  D/2, 0 where j >= D/2.
    cos = cos_ref[...]
    sin_hi = sin_hi_ref[...]
    sin_lo = sin_lo_ref[...]
    n = q_ref.shape[-1]  # TS * D (static)

    def apply(x_ref, o_ref):
        x = x_ref[...].astype(jnp.float32)           # rope_full_precision=True
        # roll by +half: position (s, j>=D/2) receives x1 = x[s, j-D/2].
        r_hi = pltpu.roll(x, half, 1)
        # roll by n-half (== -half mod n): position (s, j<D/2) receives
        # x2 = x[s, j+D/2].  Wrapped lanes are multiplied by exact 0.
        r_lo = pltpu.roll(x, n - half, 1)
        out = x * cos + r_hi * sin_hi + r_lo * sin_lo
        o_ref[...] = out.astype(o_ref.dtype)

    apply(q_ref, qo_ref)
    apply(k_ref, ko_ref)


# ----------------------------------------------------------------------------
# Wrapper
# ----------------------------------------------------------------------------
def _make_flat_tables(cos_cached, sin_cached, seq_len, dim):
    """Flattened f32 cos table and sign/zero-folded sin tables, shape (1, S*D)."""
    cos = cos_cached[:seq_len, :].astype(jnp.float32)   # (S, D)
    sin = sin_cached[:seq_len, :].astype(jnp.float32)   # (S, D)
    half = dim // 2
    j = jnp.arange(dim)
    hi = (j >= half)[None, :]
    sin_hi = jnp.where(hi, sin, 0.0)       # multiplies rolled-in x1 (+ sign)
    sin_lo = jnp.where(~hi, -sin, 0.0)     # multiplies rolled-in x2 (- sign)
    n = seq_len * dim
    return cos.reshape(1, n), sin_hi.reshape(1, n), sin_lo.reshape(1, n)


def _choose_seq_tile(bh, seq_len, dim, itemsize, target_bytes):
    """Largest S-tile (divisor of S) whose q tile fits the byte budget and whose
    flattened lane width is a multiple of 128 (or full extent)."""
    candidates = [
        ts for ts in range(1, seq_len + 1)
        if seq_len % ts == 0 and ((ts * dim) % 128 == 0 or ts == seq_len)
    ]
    fits = [ts for ts in candidates if bh * ts * dim * itemsize <= target_bytes]
    if fits:
        return max(fits)
    return min(candidates)  # smallest legal tile; may exceed target but correct


def rope_pallas(q, k, cos_cached, sin_cached, seq_len, *,
                block_target_bytes=512 * 1024):
    """Apply RoPE to q, k of shape [B, H, S, D]; returns (q_embed, k_embed)."""
    B, H, S, D = q.shape
    assert k.shape == q.shape
    assert S == seq_len
    assert D % 2 == 0
    BH = B * H

    cos_flat, sin_hi, sin_lo = _make_flat_tables(cos_cached, sin_cached, S, D)

    # Lane-dense flattening: [B, H, S, D] -> [B*H, S*D] (contiguous, no copy).
    qf = q.reshape(BH, S * D)
    kf = k.reshape(BH, S * D)

    ts = _choose_seq_tile(BH, S, D, q.dtype.itemsize, block_target_bytes)
    n_steps = S // ts
    blk = ts * D

    qk_spec = pl.BlockSpec((BH, blk), lambda s: (0, s))
    tbl_spec = pl.BlockSpec((1, blk), lambda s: (0, s))

    kernel = functools.partial(_rope_kernel, half=D // 2)

    q_out, k_out = pl.pallas_call(
        kernel,
        grid=(n_steps,),
        in_specs=[qk_spec, qk_spec, tbl_spec, tbl_spec, tbl_spec],
        out_specs=(qk_spec, qk_spec),
        out_shape=(
            jax.ShapeDtypeStruct((BH, S * D), q.dtype),
            jax.ShapeDtypeStruct((BH, S * D), k.dtype),
        ),
        # RoPE is applied "in place" on q/k when the caller donates them.
        input_output_aliases={0: 0, 1: 1},
        compiler_params=pltpu.CompilerParams(
            dimension_semantics=("parallel",),
        ),
    )(qf, kf, cos_flat, sin_hi, sin_lo)

    return q_out.reshape(B, H, S, D), k_out.reshape(B, H, S, D)


# ----------------------------------------------------------------------------
# Init-time buffers (mirrors PyTorch __init__) and pure-JAX reference
# ----------------------------------------------------------------------------
def make_rope_tables(dim, max_seq_len=4096):
    inv_freq = 1.0 / (10000.0 ** (jnp.arange(0, dim, 2, dtype=jnp.float32) / dim))
    t = jnp.arange(max_seq_len, dtype=jnp.float32)
    freqs = jnp.einsum("i,j->ij", t, inv_freq)          # (max_seq_len, dim/2)
    emb = jnp.concatenate([freqs, freqs], axis=-1)      # (max_seq_len, dim)
    return jnp.cos(emb), jnp.sin(emb)


def rope_reference(q, k, cos_cached, sin_cached, seq_len):
    def rotate_half(x):
        h = x.shape[-1] // 2
        return jnp.concatenate([-x[..., h:], x[..., :h]], axis=-1)

    q_, k_ = q.astype(jnp.float32), k.astype(jnp.float32)
    cos = cos_cached[:seq_len, :].astype(jnp.float32)
    sin = sin_cached[:seq_len, :].astype(jnp.float32)
    q_embed = q_ * cos + rotate_half(q_) * sin
    k_embed = k_ * cos + rotate_half(k_) * sin
    return q_embed.astype(q.dtype), k_embed.astype(k.dtype)


# ----------------------------------------------------------------------------
# Demo / correctness check
# ----------------------------------------------------------------------------
if __name__ == "__main__":
    # Config 1: shapes implied by the module (single-tile path).
    B, H, S, D = 2, 4, 8, 32
    key = jax.random.PRNGKey(0)
    kq, kk = jax.random.split(key)
    q = jax.random.normal(kq, (B, H, S, D), dtype=jnp.float32).astype(jnp.bfloat16)
    k = jax.random.normal(kk, (B, H, S, D), dtype=jnp.float32).astype(jnp.bfloat16)
    cos_cached, sin_cached = make_rope_tables(D, max_seq_len=128)

    q_ref, k_ref = rope_reference(q, k, cos_cached, sin_cached, seq_len=S)
    q_out, k_out = rope_pallas(q, k, cos_cached, sin_cached, seq_len=S)
    jax.block_until_ready((q_out, k_out))

    assert q_out.dtype == q.dtype and k_out.dtype == k.dtype
    assert jnp.allclose(q_out.astype(jnp.float32), q_ref.astype(jnp.float32),
                        atol=1e-2, rtol=1e-2)
    assert jnp.allclose(k_out.astype(jnp.float32), k_ref.astype(jnp.float32),
                        atol=1e-2, rtol=1e-2)

    # Config 2: tiny tile budget to exercise the multi-step S-tiled pipeline.
    B2, H2, S2, D2 = 2, 4, 64, 32
    k2q, k2k = jax.random.split(jax.random.PRNGKey(1))
    q2 = jax.random.normal(k2q, (B2, H2, S2, D2), dtype=jnp.float32).astype(jnp.bfloat16)
    k2 = jax.random.normal(k2k, (B2, H2, S2, D2), dtype=jnp.float32).astype(jnp.bfloat16)
    cos2, sin2 = make_rope_tables(D2, max_seq_len=128)

    q2_ref, k2_ref = rope_reference(q2, k2, cos2, sin2, seq_len=S2)
    q2_out, k2_out = rope_pallas(q2, k2, cos2, sin2, seq_len=S2,
                                 block_target_bytes=8 * 1024)
    jax.block_until_ready((q2_out, k2_out))

    assert jnp.allclose(q2_out.astype(jnp.float32), q2_ref.astype(jnp.float32),
                        atol=1e-2, rtol=1e-2)
    assert jnp.allclose(k2_out.astype(jnp.float32), k2_ref.astype(jnp.float32),
                        atol=1e-2, rtol=1e-2)

    print("KERNEL_OK")
</pallas_src>

<mosaic_0001>
module attributes {stable_mosaic.version = 11 : i64} {
  func.func @_rope_kernel(%arg0: i32, %arg1: memref<8x256xbf16, #tpu.memory_space<vmem>>, %arg2: memref<8x256xbf16, #tpu.memory_space<vmem>>, %arg3: memref<1x256xf32, #tpu.memory_space<vmem>>, %arg4: memref<1x256xf32, #tpu.memory_space<vmem>>, %arg5: memref<1x256xf32, #tpu.memory_space<vmem>>, %arg6: memref<8x256xbf16, #tpu.memory_space<vmem>>, %arg7: memref<8x256xbf16, #tpu.memory_space<vmem>>) attributes {dimension_semantics = [#tpu.dimension_semantics<parallel>], iteration_bounds = array<i64: 1>, scalar_prefetch = 0 : i64, scratch_operands = 0 : i64, tpu.core_type = #tpu.core_type<tc>, window_params = [{transform_indices = @transform_0, window_bounds = array<i64: 8, 256>}, {transform_indices = @transform_1, window_bounds = array<i64: 8, 256>}, {transform_indices = @transform_2, window_bounds = array<i64: 1, 256>}, {transform_indices = @transform_3, window_bounds = array<i64: 1, 256>}, {transform_indices = @transform_4, window_bounds = array<i64: 1, 256>}, {transform_indices = @transform_5, window_bounds = array<i64: 8, 256>}, {transform_indices = @transform_6, window_bounds = array<i64: 8, 256>}]} {
    %c0 = arith.constant 0 : index
    %c0_0 = arith.constant 0 : index
    %0 = vector.load %arg3[%c0, %c0_0] : memref<1x256xf32, #tpu.memory_space<vmem>>, vector<1x256xf32>
    %c0_1 = arith.constant 0 : index
    %c0_2 = arith.constant 0 : index
    %1 = vector.load %arg4[%c0_1, %c0_2] : memref<1x256xf32, #tpu.memory_space<vmem>>, vector<1x256xf32>
    %c0_3 = arith.constant 0 : index
    %c0_4 = arith.constant 0 : index
    %2 = vector.load %arg5[%c0_3, %c0_4] : memref<1x256xf32, #tpu.memory_space<vmem>>, vector<1x256xf32>
    %c0_5 = arith.constant 0 : index
    %c0_6 = arith.constant 0 : index
    %3 = vector.load %arg1[%c0_5, %c0_6] : memref<8x256xbf16, #tpu.memory_space<vmem>>, vector<8x256xbf16>
    %4 = arith.extf %3 : vector<8x256xbf16> to vector<8x256xf32>
    %c16_i32 = arith.constant 16 : i32
    %5 = tpu.dynamic_rotate %4 by %c16_i32 dim 1 : vector<8x256xf32>, i32 -> vector<8x256xf32>
    %c240_i32 = arith.constant 240 : i32
    %6 = tpu.dynamic_rotate %4 by %c240_i32 dim 1 : vector<8x256xf32>, i32 -> vector<8x256xf32>
    %7 = vector.broadcast %0 : vector<1x256xf32> to vector<8x256xf32>
    %8 = arith.mulf %4, %7 : vector<8x256xf32>
    %9 = vector.broadcast %1 : vector<1x256xf32> to vector<8x256xf32>
    %10 = arith.mulf %5, %9 : vector<8x256xf32>
    %11 = arith.addf %8, %10 : vector<8x256xf32>
    %12 = vector.broadcast %2 : vector<1x256xf32> to vector<8x256xf32>
    %13 = arith.mulf %6, %12 : vector<8x256xf32>
    %14 = arith.addf %11, %13 : vector<8x256xf32>
    %15 = arith.truncf %14 : vector<8x256xf32> to vector<8x256xbf16>
    %c0_7 = arith.constant 0 : index
    %c0_8 = arith.constant 0 : index
    %16 = vector.load %arg6[%c0_7, %c0_8] : memref<8x256xbf16, #tpu.memory_space<vmem>>, vector<8x256xbf16>
    tpu.vector_store %arg6[%c0_7, %c0_8], %15 {strides = array<i32>} : memref<8x256xbf16, #tpu.memory_space<vmem>>, vector<8x256xbf16>,
    %c0_9 = arith.constant 0 : index
    %c0_10 = arith.constant 0 : index
    %17 = vector.load %arg2[%c0_9, %c0_10] : memref<8x256xbf16, #tpu.memory_space<vmem>>, vector<8x256xbf16>
    %18 = arith.extf %17 : vector<8x256xbf16> to vector<8x256xf32>
    %c16_i32_11 = arith.constant 16 : i32
    %19 = tpu.dynamic_rotate %18 by %c16_i32_11 dim 1 : vector<8x256xf32>, i32 -> vector<8x256xf32>
    %c240_i32_12 = arith.constant 240 : i32
    %20 = tpu.dynamic_rotate %18 by %c240_i32_12 dim 1 : vector<8x256xf32>, i32 -> vector<8x256xf32>
    %21 = vector.broadcast %0 : vector<1x256xf32> to vector<8x256xf32>
    %22 = arith.mulf %18, %21 : vector<8x256xf32>
    %23 = vector.broadcast %1 : vector<1x256xf32> to vector<8x256xf32>
    %24 = arith.mulf %19, %23 : vector<8x256xf32>
    %25 = arith.addf %22, %24 : vector<8x256xf32>
    %26 = vector.broadcast %2 : vector<1x256xf32> to vector<8x256xf32>
    %27 = arith.mulf %20, %26 : vector<8x256xf32>
    %28 = arith.addf %25, %27 : vector<8x256xf32>
    %29 = arith.truncf %28 : vector<8x256xf32> to vector<8x256xbf16>
    %c0_13 = arith.constant 0 : index
    %c0_14 = arith.constant 0 : index
    %30 = vector.load %arg7[%c0_13, %c0_14] : memref<8x256xbf16, #tpu.memory_space<vmem>>, vector<8x256xbf16>
    tpu.vector_store %arg7[%c0_13, %c0_14], %29 {strides = array<i32>} : memref<8x256xbf16, #tpu.memory_space<vmem>>, vector<8x256xbf16>,
    return
  }
  func.func @transform_0(%arg0: i32) -> (i32, i32) {
    %c0_i32 = arith.constant 0 : i32
    %c0_i32_0 = arith.constant 0 : i32
    return %c0_i32, %arg0 : i32, i32
  }
  func.func @transform_1(%arg0: i32) -> (i32, i32) {
    %c0_i32 = arith.constant 0 : i32
    %c0_i32_0 = arith.constant 0 : i32
    return %c0_i32, %arg0 : i32, i32
  }
  func.func @transform_2(%arg0: i32) -> (i32, i32) {
    %c0_i32 = arith.constant 0 : i32
    %c0_i32_0 = arith.constant 0 : i32
    return %c0_i32, %arg0 : i32, i32
  }
  func.func @transform_3(%arg0: i32) -> (i32, i32) {
    %c0_i32 = arith.constant 0 : i32
    %c0_i32_0 = arith.constant 0 : i32
    return %c0_i32, %arg0 : i32, i32
  }
  func.func @transform_4(%arg0: i32) -> (i32, i32) {
    %c0_i32 = arith.constant 0 : i32
    %c0_i32_0 = arith.constant 0 : i32
    return %c0_i32, %arg0 : i32, i32
  }
  func.func @transform_5(%arg0: i32) -> (i32, i32) {
    %c0_i32 = arith.constant 0 : i32
    %c0_i32_0 = arith.constant 0 : i32
    return %c0_i32, %arg0 : i32, i32
  }
  func.func @transform_6(%arg0: i32) -> (i32, i32) {
    %c0_i32 = arith.constant 0 : i32
    %c0_i32_0 = arith.constant 0 : i32
    return %c0_i32, %arg0 : i32, i32
  }
}

</mosaic_0001>

<llo_original>
// kernel: tpu_custom_call.1
$region0: #{tpu_custom_call.1}
  #allocation0 [shape = 'u32[]', space=smem, size = 0x4, offset = 0x4, fixed_abs, tag = 'smem constant byte address 0x4 - core index']
  #allocation1 [shape = 'u32[72,128]{1,0:T(1,128)}', space=vmem, size = 0x9000, scoped, tag = 'internal scratch']
  %s0 = inlined_call_operand.hbm [shape: bf16[8,256], index: 0, kind: input, shape index: {}, may-alias: {0,5}]
  %s1 = inlined_call_operand.hbm [shape: bf16[8,256], index: 1, kind: input, shape index: {}, may-alias: {1,6}]
  %s2 = inlined_call_operand.vmem [shape: f32[1,256], index: 2, kind: input, shape index: {}]
  %s3 = inlined_call_operand.vmem [shape: f32[1,256], index: 3, kind: input, shape index: {}]
  %s4 = inlined_call_operand.vmem [shape: f32[1,256], index: 4, kind: input, shape index: {}]
  %s5 = inlined_call_operand.hbm [shape: bf16[8,256], index: 5, kind: output, shape index: {0}, may-alias: {0,5}]
  %s6 = inlined_call_operand.hbm [shape: bf16[8,256], index: 6, kind: output, shape index: {1}, may-alias: {1,6}]
  %7 = xla_tuple %s5, %s6
  %s8 = sld [smem:[#allocation0]]
  $region46: #{tpu_custom_call.1} parent=0
    _
  %s10 = ssub.s32 1, %s8
  %s11 = scalar_select 0, %s10, %s8
  $region1: #{tpu_custom_call.1} parent=0
    #allocation2 [shape = 'u8[4096]{0}', space=vmem, size = 0x1000, scoped, tag = 'input window, operand 0, single buffered']
    #allocation3 [shape = 's32[1]{0}', space=sflag, size = 0x4, scoped, tag = 'scoped memory for tpu_custom_call.1']
    #allocation4 [shape = 's32[1]{0}', space=sflag, size = 0x4, scoped, tag = 'scoped memory for tpu_custom_call.1']
    #allocation5 [shape = 'u8[4096]{0}', space=vmem, size = 0x1000, scoped, tag = 'input window, operand 1, single buffered']
    #allocation6 [shape = 's32[1]{0}', space=sflag, size = 0x4, scoped, tag = 'scoped memory for tpu_custom_call.1']
    #allocation7 [shape = 'u8[4096]{0}', space=vmem, size = 0x1000, scoped, tag = 'output window, operand 0, single buffered']
    #allocation8 [shape = 'u8[4096]{0}', space=vmem, size = 0x1000, scoped, tag = 'output window, operand 1, single buffered']
    #allocation9 [shape = 's32[1]{0}', space=sflag, size = 0x4, scoped, tag = 'scoped memory for tpu_custom_call.1']
    %12 = vsyncpa [#allocation3], 0
    %13 = vsyncpa [#allocation6], 0
    %14 = vsyncpa [#allocation4], 0
    %15 = vsyncpa [#allocation9], 0
    // Predicated region
    $region2: #{tpu_custom_call.1} parent=1 // pred_check
      _
    $region3: #{tpu_custom_call.1} parent=1 // pred_check_branch
      %17 = sbr.rel (0) target = $region5
    $region4: #{tpu_custom_call.1} parent=1 // pred_region
      %19 = vsyncadd [#allocation3], 0
      %s21 = sshll.u32 %s0, 4
      %s22 = int_to_ptr.hbm [resolvable:$true] %s21
      %s23 = sshll.u32 [#allocation2], 4
      %s24 = int_to_ptr.vmem [resolvable:$true] %s23
      %26 = dma.hbm_to_vmem [thread:$0]  %s22, 128, %s24, [#allocation3]
    $region5: #{tpu_custom_call.1} parent=1 // pred_fallthru
      _
    // Predicated region
    $region6: #{tpu_custom_call.1} parent=1 // pred_check
      _
    $region7: #{tpu_custom_call.1} parent=1 // pred_check_branch
      %28 = sbr.rel (0) target = $region9
    $region8: #{tpu_custom_call.1} parent=1 // pred_region
      %30 = vsyncadd [#allocation6], 0
      %s32 = sshll.u32 %s1, 4
      %s33 = int_to_ptr.hbm [resolvable:$true] %s32
      %s34 = sshll.u32 [#allocation5], 4
      %s35 = int_to_ptr.vmem [resolvable:$true] %s34
      %37 = dma.hbm_to_vmem [thread:$0]  %s33, 128, %s35, [#allocation6]
    $region9: #{tpu_custom_call.1} parent=1 // pred_fallthru
      _
    // Predicated region
    $region10: #{tpu_custom_call.1} parent=1 // pred_check
      _
    $region11: #{tpu_custom_call.1} parent=1 // pred_check_branch
      %39 = sbr.rel (0) target = $region13
    $region12: #{tpu_custom_call.1} parent=1 // pred_region
      _
    $region13: #{tpu_custom_call.1} parent=1 // pred_fallthru
      _
    // Predicated region
    $region14: #{tpu_custom_call.1} parent=1 // pred_check
      _
    $region15: #{tpu_custom_call.1} parent=1 // pred_check_branch
      %41 = sbr.rel (0) target = $region17
    $region16: #{tpu_custom_call.1} parent=1 // pred_region
      _
    $region17: #{tpu_custom_call.1} parent=1 // pred_fallthru
      _
    // Predicated region
    $region18: #{tpu_custom_call.1} parent=1 // pred_check
      _
    $region19: #{tpu_custom_call.1} parent=1 // pred_check_branch
      %43 = sbr.rel (0) target = $region21
    $region20: #{tpu_custom_call.1} parent=1 // pred_region
      _
    $region21: #{tpu_custom_call.1} parent=1 // pred_fallthru
      _
    // Predicated region
    $region22: #{tpu_custom_call.1} parent=1 // pred_check
      _
    $region23: #{tpu_custom_call.1} parent=1 // pred_check_branch
      %45 = sbr.rel (0) target = $region25
    $region24: #{tpu_custom_call.1} parent=1 // pred_region
      %47 = dma.done [#allocation3], 128
    $region25: #{tpu_custom_call.1} parent=1 // pred_fallthru
      _
    // Predicated region
    $region26: #{tpu_custom_call.1} parent=1 // pred_check
      _
    $region27: #{tpu_custom_call.1} parent=1 // pred_check_branch
      %49 = sbr.rel (0) target = $region29
    $region28: #{tpu_custom_call.1} parent=1 // pred_region
      %51 = dma.done [#allocation6], 128
    $region29: #{tpu_custom_call.1} parent=1 // pred_fallthru
      _
    %v52 = vld [vmem:[%s2] sm:$0x3]
    %v53 = vld [vmem:[%s3] sm:$0x3]
    %v54 = vld [vmem:[%s4] sm:$0x3]
    %v55 = vld [vmem:[#allocation2] sm:$0xff]
    %v56 = vunpack.c.l.bf16 %v55
    %v57 = vunpack.c.h.bf16 %v55
    %58 = vrot.lane.b32.xlu0 %v56, 16
    %v59 = vpop.permute.xlu0 %58
    %60 = vrot.lane.b32.xlu0 %v57, 16
    %v61 = vpop.permute.xlu0 %60
    %v62 = vlaneseq
    %v63 = vand.u32 %v62, 127
    %vm64 = vcmp.lt.s32.totalorder %v63, 16
    %v65 = vsel %vm64, %v59, %v61
    %v66 = vsel %vm64, %v61, %v59
    %67 = vrot.lane.b32.xlu0 %v56, 112
    %v68 = vpop.permute.xlu0 %67
    %69 = vrot.lane.b32.xlu0 %v57, 112
    %v70 = vpop.permute.xlu0 %69
    %vm71 = vcmp.lt.s32.totalorder %v63, 112
    %v72 = vsel %vm71, %v68, %v70
    %v73 = vsel %vm71, %v70, %v68
    %v75 = vperm.slane %v52, 0
    %v76 = vperm.slane %v52, 1
    %v79 = vmul.f32 %v56, %v75
    %v80 = vmul.f32 %v57, %v76
    %v82 = vperm.slane %v53, 0
    %v83 = vperm.slane %v53, 1
    %v86 = vmul.f32 %v66, %v82
    %v87 = vmul.f32 %v65, %v83
    %v88 = vadd.f32 %v79, %v86
    %v89 = vadd.f32 %v80, %v87
    %v91 = vperm.slane %v54, 0
    %v92 = vperm.slane %v54, 1
    %v95 = vmul.f32 %v72, %v91
    %v96 = vmul.f32 %v73, %v92
    %v97 = vadd.f32 %v88, %v95
    %v98 = vadd.f32 %v89, %v96
    %v99 = vpack.c.bf16 %v98, %v97
    %100 = vst [vmem:[#allocation7] sm:$0xff] %v99
    %v101 = vld [vmem:[#allocation5] sm:$0xff]
    %v102 = vunpack.c.l.bf16 %v101
    %v103 = vunpack.c.h.bf16 %v101
    %104 = vrot.lane.b32.xlu0 %v102, 16
    %v105 = vpop.permute.xlu0 %104
    %106 = vrot.lane.b32.xlu0 %v103, 16
    %v107 = vpop.permute.xlu0 %106
    %v108 = vsel %vm64, %v105, %v107
    %v109 = vsel %vm64, %v107, %v105
    %110 = vrot.lane.b32.xlu0 %v102, 112
    %v111 = vpop.permute.xlu0 %110
    %112 = vrot.lane.b32.xlu0 %v103, 112
    %v113 = vpop.permute.xlu0 %112
    %v114 = vsel %vm71, %v111, %v113
    %v115 = vsel %vm71, %v113, %v111
    %v116 = vmul.f32 %v102, %v75
    %v117 = vmul.f32 %v103, %v76
    %v118 = vmul.f32 %v109, %v82
    %v119 = vmul.f32 %v108, %v83
    %v120 = vadd.f32 %v116, %v118
    %v121 = vadd.f32 %v117, %v119
    %v122 = vmul.f32 %v114, %v91
    %v123 = vmul.f32 %v115, %v92
    %v124 = vadd.f32 %v120, %v122
    %v125 = vadd.f32 %v121, %v123
    %v126 = vpack.c.bf16 %v125, %v124
    %127 = vst [vmem:[#allocation8] sm:$0xff] %v126
    // Predicated region
    $region30: #{tpu_custom_call.1} parent=1 // pred_check
      _
    $region31: #{tpu_custom_call.1} parent=1 // pred_check_branch
      %129 = sbr.rel (0) target = $region33
    $region32: #{tpu_custom_call.1} parent=1 // pred_region
      %131 = vsyncadd [#allocation4], 0
      %s133 = sshll.u32 [#allocation7], 4
      %s134 = int_to_ptr.vmem [resolvable:$true] %s133
      %s135 = sshll.u32 %s5, 4
      %s136 = int_to_ptr.hbm [resolvable:$true] %s135
      %138 = dma.vmem_to_hbm [thread:$0]  %s134, 128, %s136, [#allocation4]
    $region33: #{tpu_custom_call.1} parent=1 // pred_fallthru
      _
    // Predicated region
    $region34: #{tpu_custom_call.1} parent=1 // pred_check
      _
    $region35: #{tpu_custom_call.1} parent=1 // pred_check_branch
      %140 = sbr.rel (0) target = $region37
    $region36: #{tpu_custom_call.1} parent=1 // pred_region
      %142 = vsyncadd [#allocation9], 0
      %s144 = sshll.u32 [#allocation8], 4
      %s145 = int_to_ptr.vmem [resolvable:$true] %s144
      %s146 = sshll.u32 %s6, 4
      %s147 = int_to_ptr.hbm [resolvable:$true] %s146
      %149 = dma.vmem_to_hbm [thread:$0]  %s145, 128, %s147, [#allocation9]
    $region37: #{tpu_custom_call.1} parent=1 // pred_fallthru
      _
    // Predicated region
    $region38: #{tpu_custom_call.1} parent=1 // pred_check
      _
    $region39: #{tpu_custom_call.1} parent=1 // pred_check_branch
      %151 = sbr.rel (0) target = $region41
    $region40: #{tpu_custom_call.1} parent=1 // pred_region
      %153 = dma.done [#allocation4], 128
    $region41: #{tpu_custom_call.1} parent=1 // pred_fallthru
      _
    // Predicated region
    $region42: #{tpu_custom_call.1} parent=1 // pred_check
      _
    $region43: #{tpu_custom_call.1} parent=1 // pred_check_branch
      %155 = sbr.rel (0) target = $region45
    $region44: #{tpu_custom_call.1} parent=1 // pred_region
      %157 = dma.done [#allocation9], 128
    $region45: #{tpu_custom_call.1} parent=1 // pred_fallthru
      _
    %158 = vsyncpa [#allocation3], 1
    %159 = vsyncpa [#allocation6], 1
    %160 = vsyncpa [#allocation4], 1
    %161 = vsyncpa [#allocation9], 1

</llo_original>
